<compile_context>
chip_gen: v7x
topology: tpu7x:2x2x1
jax: 0.10.0
libtpu: 0.0.40
codegen_flags: <defaults>
</compile_context>

<pallas_src>
import functools

import jax
import jax.numpy as jnp
import numpy as np
from jax.experimental import pallas as pl
from jax.experimental.pallas import tpu as pltpu


def _bilerp_kernel(img_ref, xs_ref, out_ref, *, H, W, C):
    TN = xs_ref.shape[1]                      # query points in this tile (lane axis)

    xy = xs_ref[...]                          # (2, TN), single load
    sx = xy[0:1, :] * jnp.float32(W)          # (1, TN)
    sy = xy[1:2, :] * jnp.float32(H)          # (1, TN)

    # torch .long() truncates toward zero -> same as astype(int32)
    ix = sx.astype(jnp.int32)
    iy = sy.astype(jnp.int32)
    lx = sx - ix.astype(jnp.float32)          # lerp_weights[:, 0]
    ly = sy - iy.astype(jnp.float32)          # lerp_weights[:, 1]

    x0 = jnp.clip(ix, 0, W - 1)
    y0 = jnp.clip(iy, 0, H - 1)
    x1 = jnp.minimum(x0 + 1, W - 1)
    y1 = jnp.minimum(y0 + 1, H - 1)

    # Separable per-point selector matrices (points on the lane axis).
    # Mask-multiply accumulation; coincident corners add their weights.
    colx = jax.lax.broadcasted_iota(jnp.int32, (W, TN), 0)        # (W, TN)
    wxT = ((colx == x0).astype(jnp.float32) * (1.0 - lx)
           + (colx == x1).astype(jnp.float32) * lx)               # (W, TN)

    rowy = jax.lax.broadcasted_iota(jnp.int32, (H, TN), 0)        # (H, TN)
    wyT = ((rowy == y0).astype(jnp.float32) * (1.0 - ly)
           + (rowy == y1).astype(jnp.float32) * ly)               # (H, TN)

    # Stage 1 (MXU): contract over x.  Result is lane-dense in the point axis.
    gx = jnp.dot(img_ref[...], wxT,
                 preferred_element_type=jnp.float32)              # (C*H, TN)

    # Stage 2: contract over y, per channel (C is small & static).
    parts = []
    for c in range(C):
        g_c = gx[c * H:(c + 1) * H, :]                            # (H, TN) static slice
        parts.append(jnp.sum(g_c * wyT, axis=0, keepdims=True))   # (1, TN)
    out_ref[...] = jnp.concatenate(parts, axis=0)                 # (C, TN), lane-dense


@functools.partial(jax.jit, static_argnames=("tile_n",))
def bilerp_sample(image_hwc, xs, *, tile_n=128):
    """image_hwc: (H, W, C) f32; xs: (N, 2) f32 normalized coords. Returns (N, C)."""
    H, W, C = image_hwc.shape
    N = xs.shape[0]

    # Pad the point count to a tile multiple (extra points are wasted lanes).
    n_pad = (-N) % tile_n
    xs_t = jnp.transpose(xs.astype(jnp.float32), (1, 0))          # (2, N)
    if n_pad:
        xs_t = jnp.pad(xs_t, ((0, 0), (0, n_pad)))
    NP = N + n_pad

    # (C*H, W) image layout: img2[c*H + y, x] = image[y, x, c]
    img2 = jnp.transpose(image_hwc.astype(jnp.float32), (2, 0, 1)).reshape(C * H, W)

    kernel = functools.partial(_bilerp_kernel, H=H, W=W, C=C)

    flops = 2 * C * H * W * NP + 6 * (H + W) * NP + 2 * C * H * NP
    bytes_accessed = img2.size * 4 + xs_t.size * 4 + C * NP * 4

    out_cn = pl.pallas_call(
        kernel,
        out_shape=jax.ShapeDtypeStruct((C, NP), jnp.float32),
        grid_spec=pltpu.PrefetchScalarGridSpec(
            num_scalar_prefetch=0,
            grid=(NP // tile_n,),
            in_specs=[
                # Full image, constant block index -> DMA'd once, kept resident.
                pl.BlockSpec((C * H, W), lambda i: (0, 0)),
                # Query tile: points on the lane axis.
                pl.BlockSpec((2, tile_n), lambda i: (0, i)),
            ],
            out_specs=pl.BlockSpec((C, tile_n), lambda i: (0, i)),
        ),
        compiler_params=pltpu.CompilerParams(
            dimension_semantics=("parallel",)),
        cost_estimate=pl.CostEstimate(
            flops=flops, transcendentals=0, bytes_accessed=bytes_accessed),
    )(img2, xs_t)

    return jnp.transpose(out_cn[:, :N], (1, 0))                   # (N, C)


def _reference(image_hwc, xs):
    """Pure-JAX mirror of the PyTorch forward (for verification)."""
    H, W, _ = image_hwc.shape
    s = xs * jnp.array([W, H], jnp.float32)
    idx = s.astype(jnp.int32)
    lw = s - idx.astype(jnp.float32)
    x0 = jnp.clip(idx[:, 0], 0, W - 1)
    y0 = jnp.clip(idx[:, 1], 0, H - 1)
    x1 = jnp.minimum(x0 + 1, W - 1)
    y1 = jnp.minimum(y0 + 1, H - 1)
    lx = lw[:, 0:1]
    ly = lw[:, 1:2]
    return (image_hwc[y0, x0] * (1 - lx) * (1 - ly)
            + image_hwc[y0, x1] * lx * (1 - ly)
            + image_hwc[y1, x0] * (1 - lx) * ly
            + image_hwc[y1, x1] * lx * ly)


if __name__ == "__main__":
    # TODO(synk): read_image(filename) file I/O is not reproduced; a synthetic
    # image stands in for the loaded texture.
    H, W, C = 16, 16, 3
    N = 256                  # 2 grid steps at tile_n=128 (both v7x TCs get work)

    key = jax.random.PRNGKey(0)
    k_img, k_xs = jax.random.split(key)
    image = jax.random.uniform(k_img, (H, W, C), dtype=jnp.float32)
    xs = jax.random.uniform(k_xs, (N, 2), dtype=jnp.float32)   # normalized coords in [0,1)

    out = bilerp_sample(image, xs, tile_n=128)
    out = jax.block_until_ready(out)

    ref = _reference(image, xs)
    np.testing.assert_allclose(np.asarray(out), np.asarray(ref),
                               rtol=1e-5, atol=1e-5)
    print("KERNEL_OK")
</pallas_src>

<mosaic_0001>
module attributes {stable_mosaic.version = 11 : i64} {
  func.func @_bilerp_kernel(%arg0: i32, %arg1: memref<48x16xf32, #tpu.memory_space<vmem>>, %arg2: memref<2x128xf32, #tpu.memory_space<vmem>>, %arg3: memref<3x128xf32, #tpu.memory_space<vmem>>) attributes {dimension_semantics = [#tpu.dimension_semantics<parallel>], iteration_bounds = array<i64: 2>, scalar_prefetch = 0 : i64, scratch_operands = 0 : i64, tpu.core_type = #tpu.core_type<tc>, window_params = [{pipeline_mode = #tpu.pipeline_mode<synchronous>, transform_indices = @transform_0, window_bounds = array<i64: 48, 16>}, {transform_indices = @transform_1, window_bounds = array<i64: 2, 128>}, {transform_indices = @transform_2, window_bounds = array<i64: 3, 128>}]} {
    %c0 = arith.constant 0 : index
    %c0_0 = arith.constant 0 : index
    %0 = vector.load %arg2[%c0, %c0_0] : memref<2x128xf32, #tpu.memory_space<vmem>>, vector<2x128xf32>
    %1 = vector.extract_strided_slice %0 {offsets = [0, 0], sizes = [1, 128], strides = [1, 1]} : vector<2x128xf32> to vector<1x128xf32>
    %cst = arith.constant 1.600000e+01 : f32
    %2 = vector.broadcast %cst : f32 to vector<1x128xf32>
    %3 = arith.mulf %1, %2 : vector<1x128xf32>
    %4 = vector.extract_strided_slice %0 {offsets = [1, 0], sizes = [1, 128], strides = [1, 1]} : vector<2x128xf32> to vector<1x128xf32>
    %cst_1 = arith.constant 1.600000e+01 : f32
    %5 = vector.broadcast %cst_1 : f32 to vector<1x128xf32>
    %6 = arith.mulf %4, %5 : vector<1x128xf32>
    %7 = arith.fptosi %3 : vector<1x128xf32> to vector<1x128xi32>
    %8 = arith.fptosi %6 : vector<1x128xf32> to vector<1x128xi32>
    %9 = arith.sitofp %7 : vector<1x128xi32> to vector<1x128xf32>
    %10 = arith.subf %3, %9 : vector<1x128xf32>
    %11 = arith.sitofp %8 : vector<1x128xi32> to vector<1x128xf32>
    %12 = arith.subf %6, %11 : vector<1x128xf32>
    %c0_i32 = arith.constant 0 : i32
    %c15_i32 = arith.constant 15 : i32
    %13 = vector.broadcast %c0_i32 : i32 to vector<1x128xi32>
    %14 = arith.maxsi %13, %7 : vector<1x128xi32>
    %15 = vector.broadcast %c15_i32 : i32 to vector<1x128xi32>
    %16 = arith.minsi %15, %14 : vector<1x128xi32>
    %c0_i32_2 = arith.constant 0 : i32
    %c15_i32_3 = arith.constant 15 : i32
    %17 = vector.broadcast %c0_i32_2 : i32 to vector<1x128xi32>
    %18 = arith.maxsi %17, %8 : vector<1x128xi32>
    %19 = vector.broadcast %c15_i32_3 : i32 to vector<1x128xi32>
    %20 = arith.minsi %19, %18 : vector<1x128xi32>
    %c1_i32 = arith.constant 1 : i32
    %21 = vector.broadcast %c1_i32 : i32 to vector<1x128xi32>
    %22 = arith.addi %16, %21 : vector<1x128xi32>
    %c15_i32_4 = arith.constant 15 : i32
    %23 = vector.broadcast %c15_i32_4 : i32 to vector<1x128xi32>
    %24 = arith.minsi %22, %23 : vector<1x128xi32>
    %c1_i32_5 = arith.constant 1 : i32
    %25 = vector.broadcast %c1_i32_5 : i32 to vector<1x128xi32>
    %26 = arith.addi %20, %25 : vector<1x128xi32>
    %c15_i32_6 = arith.constant 15 : i32
    %27 = vector.broadcast %c15_i32_6 : i32 to vector<1x128xi32>
    %28 = arith.minsi %26, %27 : vector<1x128xi32>
    %29 = tpu.iota {dimensions = array<i32: 0>} : vector<16x128xi32>
    %30 = vector.broadcast %16 : vector<1x128xi32> to vector<16x128xi32>
    %31 = arith.cmpi eq, %29, %30 : vector<16x128xi32>
    %32 = arith.extui %31 : vector<16x128xi1> to vector<16x128xi32>
    %33 = arith.sitofp %32 : vector<16x128xi32> to vector<16x128xf32>
    %cst_7 = arith.constant 1.000000e+00 : f32
    %34 = vector.broadcast %cst_7 : f32 to vector<1x128xf32>
    %35 = arith.subf %34, %10 : vector<1x128xf32>
    %36 = vector.broadcast %35 : vector<1x128xf32> to vector<16x128xf32>
    %37 = arith.mulf %33, %36 : vector<16x128xf32>
    %38 = vector.broadcast %24 : vector<1x128xi32> to vector<16x128xi32>
    %39 = arith.cmpi eq, %29, %38 : vector<16x128xi32>
    %40 = arith.extui %39 : vector<16x128xi1> to vector<16x128xi32>
    %41 = arith.sitofp %40 : vector<16x128xi32> to vector<16x128xf32>
    %42 = vector.broadcast %10 : vector<1x128xf32> to vector<16x128xf32>
    %43 = arith.mulf %41, %42 : vector<16x128xf32>
    %44 = arith.addf %37, %43 : vector<16x128xf32>
    %45 = tpu.iota {dimensions = array<i32: 0>} : vector<16x128xi32>
    %46 = vector.broadcast %20 : vector<1x128xi32> to vector<16x128xi32>
    %47 = arith.cmpi eq, %45, %46 : vector<16x128xi32>
    %48 = arith.extui %47 : vector<16x128xi1> to vector<16x128xi32>
    %49 = arith.sitofp %48 : vector<16x128xi32> to vector<16x128xf32>
    %cst_8 = arith.constant 1.000000e+00 : f32
    %50 = vector.broadcast %cst_8 : f32 to vector<1x128xf32>
    %51 = arith.subf %50, %12 : vector<1x128xf32>
    %52 = vector.broadcast %51 : vector<1x128xf32> to vector<16x128xf32>
    %53 = arith.mulf %49, %52 : vector<16x128xf32>
    %54 = vector.broadcast %28 : vector<1x128xi32> to vector<16x128xi32>
    %55 = arith.cmpi eq, %45, %54 : vector<16x128xi32>
    %56 = arith.extui %55 : vector<16x128xi1> to vector<16x128xi32>
    %57 = arith.sitofp %56 : vector<16x128xi32> to vector<16x128xf32>
    %58 = vector.broadcast %12 : vector<1x128xf32> to vector<16x128xf32>
    %59 = arith.mulf %57, %58 : vector<16x128xf32>
    %60 = arith.addf %53, %59 : vector<16x128xf32>
    %c0_9 = arith.constant 0 : index
    %c0_10 = arith.constant 0 : index
    %61 = vector.load %arg1[%c0_9, %c0_10] : memref<48x16xf32, #tpu.memory_space<vmem>>, vector<48x16xf32>
    %cst_11 = arith.constant dense<0.000000e+00> : vector<48x128xf32>
    %62 = tpu.matmul %61, %44, %cst_11 {dimension_numbers = #tpu.dot_dimension_numbers<[1], [0], [0], [1], [0, 0, 1, 1], [], []>} : vector<48x16xf32>, vector<16x128xf32>, vector<48x128xf32> -> vector<48x128xf32>
    %63 = vector.extract_strided_slice %62 {offsets = [0, 0], sizes = [16, 128], strides = [1, 1]} : vector<48x128xf32> to vector<16x128xf32>
    %64 = arith.mulf %63, %60 : vector<16x128xf32>
    %cst_12 = arith.constant dense<0.000000e+00> : vector<128xf32>
    %65 = vector.multi_reduction <add>, %64, %cst_12 [0] : vector<16x128xf32> to vector<128xf32>
    %66 = vector.shape_cast %65 : vector<128xf32> to vector<1x128xf32>
    %67 = vector.extract_strided_slice %62 {offsets = [16, 0], sizes = [16, 128], strides = [1, 1]} : vector<48x128xf32> to vector<16x128xf32>
    %68 = arith.mulf %67, %60 : vector<16x128xf32>
    %cst_13 = arith.constant dense<0.000000e+00> : vector<128xf32>
    %69 = vector.multi_reduction <add>, %68, %cst_13 [0] : vector<16x128xf32> to vector<128xf32>
    %70 = vector.shape_cast %69 : vector<128xf32> to vector<1x128xf32>
    %71 = vector.extract_strided_slice %62 {offsets = [32, 0], sizes = [16, 128], strides = [1, 1]} : vector<48x128xf32> to vector<16x128xf32>
    %72 = arith.mulf %71, %60 : vector<16x128xf32>
    %cst_14 = arith.constant dense<0.000000e+00> : vector<128xf32>
    %73 = vector.multi_reduction <add>, %72, %cst_14 [0] : vector<16x128xf32> to vector<128xf32>
    %74 = vector.shape_cast %73 : vector<128xf32> to vector<1x128xf32>
    %75 = tpu.concatenate %66, %70, %74 in 0 : vector<1x128xf32>, vector<1x128xf32>, vector<1x128xf32> -> vector<3x128xf32>
    %c0_15 = arith.constant 0 : index
    %c0_16 = arith.constant 0 : index
    %76 = vector.load %arg3[%c0_15, %c0_16] : memref<3x128xf32, #tpu.memory_space<vmem>>, vector<3x128xf32>
    tpu.vector_store %arg3[%c0_15, %c0_16], %75 {strides = array<i32>} : memref<3x128xf32, #tpu.memory_space<vmem>>, vector<3x128xf32>,
    return
  }
  func.func @transform_0(%arg0: i32) -> (i32, i32) {
    %c0_i32 = arith.constant 0 : i32
    %c0_i32_0 = arith.constant 0 : i32
    %c0_i32_1 = arith.constant 0 : i32
    return %c0_i32, %c0_i32_0 : i32, i32
  }
  func.func @transform_1(%arg0: i32) -> (i32, i32) {
    %c0_i32 = arith.constant 0 : i32
    %c0_i32_0 = arith.constant 0 : i32
    return %c0_i32, %arg0 : i32, i32
  }
  func.func @transform_2(%arg0: i32) -> (i32, i32) {
    %c0_i32 = arith.constant 0 : i32
    %c0_i32_0 = arith.constant 0 : i32
    return %c0_i32, %arg0 : i32, i32
  }
}

</mosaic_0001>

<llo_original>
// kernel: bilerp_sample.1
$region0: #{bilerp_sample.1}
  #allocation0 [shape = 'u32[]', space=smem, size = 0x4, offset = 0x4, fixed_abs, tag = 'smem constant byte address 0x4 - core index']
  #allocation1 [shape = 'u32[144,128]{1,0:T(1,128)}', space=vmem, size = 0x12000, scoped, tag = 'internal scratch']
  %s0 = inlined_call_operand.hbm [shape: f32[48,16], index: 0, kind: input, shape index: {}]
  %s1 = inlined_call_operand.vmem [shape: f32[2,256], index: 1, kind: input, shape index: {}]
  %s2 = inlined_call_operand.hbm [shape: f32[3,256], index: 2, kind: output, shape index: {}]
  %s3 = sld [smem:[#allocation0]]
  $region45: #{bilerp_sample.1} parent=0
    _
  %s5 = ssub.s32 1, %s3
  %s6 = scalar_select 0, %s5, %s3
  $region1: #{bilerp_sample.1} parent=0
    #allocation2 [shape = 'u8[24576]{0}', space=vmem, size = 0x6000, scoped, tag = 'input window, operand 0, single buffered']
    #allocation3 [shape = 's32[2]{0}', space=sflag, size = 0x8, scoped, tag = 'scoped memory for bilerp_sample.1']
    #allocation4 [shape = 's32[2]{0}', space=sflag, size = 0x8, scoped, tag = 'scoped memory for bilerp_sample.1']
    #allocation5 [shape = 'u8[4096]{0}', space=vmem, size = 0x1000, scoped, tag = 'output window, operand 0']
    %7 = vsyncpa [#allocation3], 0
    %8 = vsyncpa [#allocation4], 0
    %s9 = scalar_lea.sflag [#allocation4], 1
    %10 = vsyncpa %s9, 0
    loop: start=0, step=1, limit=4
    $region2: #{bilerp_sample.1} parent=1 // loop_pre_header
      _
    $region3: #{bilerp_sample.1} parent=1 // loop_header
      %s12 = sphi 0, %s16
      %p13 = scmp.ge.s32.totalorder %s12, 4
      %s20 = sphi 0, %s20
      %s22 = sphi 0, %s20
      %s23 = sphi 0, %s22
      %s37 = sphi 0, %s23
      %s43 = sphi 0, %s45
      %s46 = sphi 0, %s43
      %s47 = sphi 0, %s46
      %s63 = sphi 0, %s47
      %s69 = sphi 0, %s71
      %s72 = sphi 0, %s69
      %s73 = sphi 0, %s72
      %s89 = sphi 0, %s73
    $region4: #{bilerp_sample.1} parent=1 // loop_header_branch
      %15 = sbr.rel (%p13) target = $region8
    $region5: #{bilerp_sample.1} parent=1 // loop_body
      %s17 = ssub.s32 %s12, 1
      %s18 = ssub.s32 %s12, 2
      %s19 = sadd.s32 %s12, 1
      %s21 = sadd.s32 %s20, 1
      %p24 = scmp.eq.s32.totalorder %s12, 1
      %p25 = scmp.ne.s32.totalorder %s20, %s22
      %p26 = scmp.eq.s32.totalorder %s12, 0
      %p27 = por %p25, %p26
      %p28 = scmp.ne.s32.totalorder %s20, %s22
      %p29 = scmp.eq.s32.totalorder %s17, 1
      %p30 = por %p28, %p29
      %p31 = scmp.ne.s32.totalorder %s22, %s23
      %p32 = scmp.eq.s32.totalorder %s17, 0
      %p33 = por %p31, %p32
      %p34 = scmp.ne.s32.totalorder %s22, %s23
      %p35 = scmp.eq.s32.totalorder %s18, 1
      %p36 = por %p34, %p35
      %p38 = scmp.ne.s32.totalorder %s23, %s37
      %p39 = scmp.eq.s32.totalorder %s18, 0
      %p40 = por %p38, %p39
      %s41 = ssub.s32 %s12, %s19
      %p42 = scmp.eq.s32.totalorder %s41, 0
      %s44 = sadd.s32 %s43, 1
      %s45 = scalar_select %p42, %s43, %s44
      %p48 = pneg %p42
      %p49 = scmp.eq.s32.totalorder %s12, 1
      %p50 = por %p48, %p49
      %p51 = scmp.ne.s32.totalorder %s43, %s46
      %p52 = scmp.eq.s32.totalorder %s12, 0
      %p53 = por %p51, %p52
      %p54 = scmp.ne.s32.totalorder %s43, %s46
      %p55 = scmp.eq.s32.totalorder %s17, 1
      %p56 = por %p54, %p55
      %p57 = scmp.ne.s32.totalorder %s46, %s47
      %p58 = scmp.eq.s32.totalorder %s17, 0
      %p59 = por %p57, %p58
      %p60 = scmp.ne.s32.totalorder %s46, %s47
      %p61 = scmp.eq.s32.totalorder %s18, 1
      %p62 = por %p60, %p61
      %p64 = scmp.ne.s32.totalorder %s47, %s63
      %p65 = scmp.eq.s32.totalorder %s18, 0
      %p66 = por %p64, %p65
      %s67 = ssub.s32 %s12, %s19
      %p68 = scmp.eq.s32.totalorder %s67, 0
      %s70 = sadd.s32 %s69, 1
      %s71 = scalar_select %p68, %s69, %s70
      %p74 = pneg %p68
      %p75 = scmp.eq.s32.totalorder %s12, 1
      %p76 = por %p74, %p75
      %p77 = scmp.ne.s32.totalorder %s69, %s72
      %p78 = scmp.eq.s32.totalorder %s12, 0
      %p79 = por %p77, %p78
      %p80 = scmp.ne.s32.totalorder %s69, %s72
      %p81 = scmp.eq.s32.totalorder %s17, 1
      %p82 = por %p80, %p81
      %p83 = scmp.ne.s32.totalorder %s72, %s73
      %p84 = scmp.eq.s32.totalorder %s17, 0
      %p85 = por %p83, %p84
      %p86 = scmp.ne.s32.totalorder %s72, %s73
      %p87 = scmp.eq.s32.totalorder %s18, 1
      %p88 = por %p86, %p87
      %p90 = scmp.ne.s32.totalorder %s73, %s89
      %p91 = scmp.eq.s32.totalorder %s18, 0
      %p92 = por %p90, %p91
      %p93 = scmp.le.s32.totalorder 1, %s12
      %p94 = scmp.lt.s32.totalorder %s12, 3
      %p95 = pnand %p93, %p94
      %p96 = pneg %p95
      // Predicated region
      $region9: #{bilerp_sample.1} parent=5 // pred_check
        _
      $region10: #{bilerp_sample.1} parent=5 // pred_check_branch
        %98 = sbr.rel (%p95) target = $region12
      $region11: #{bilerp_sample.1} parent=5 // pred_region
        %s99 = ssub.s32 %s12, 1
        // Predicated region
        $region13: #{bilerp_sample.1} parent=11 // pred_check
          %p100 = pneg %p33
        $region14: #{bilerp_sample.1} parent=11 // pred_check_branch
          %102 = sbr.rel (%p100) target = $region16
        $region15: #{bilerp_sample.1} parent=11 // pred_region
          %s104 = ssub.s32 768, 768
          %105 = vsyncadd [#allocation3], %s104
          %s106 = sshll.u32 [#allocation2], 4
          %s107 = int_to_ptr.vmem [resolvable:$true] %s106
          %112 = dma.hbm_to_vmem [thread:$0]  %s0, 768, %s107, [#allocation3], 128, 128, 8
        $region16: #{bilerp_sample.1} parent=11 // pred_fallthru
          _
      $region12: #{bilerp_sample.1} parent=5 // pred_fallthru
        _
      %p113 = scmp.lt.s32.totalorder %s12, 2
      // Predicated region
      $region17: #{bilerp_sample.1} parent=5 // pred_check
        %p114 = pneg %p113
      $region18: #{bilerp_sample.1} parent=5 // pred_check_branch
        %116 = sbr.rel (%p114) target = $region20
      $region19: #{bilerp_sample.1} parent=5 // pred_region
        // Predicated region
        $region21: #{bilerp_sample.1} parent=19 // pred_check
          %p117 = pneg %p53
        $region22: #{bilerp_sample.1} parent=19 // pred_check_branch
          %119 = sbr.rel (%p117) target = $region24
        $region23: #{bilerp_sample.1} parent=19 // pred_region
          %p120 = scmp.lt.s32.totalorder %s12, 1
          %s121 = scalar_select %p120, %s12, 1
          %s122 = smul.addr %s121, 2
          %s123 = scalar_lea.vmem %s1, %s122
        $region24: #{bilerp_sample.1} parent=19 // pred_fallthru
          _
      $region20: #{bilerp_sample.1} parent=5 // pred_fallthru
        _
      %p124 = scmp.le.s32.totalorder 1, %s12
      %p125 = scmp.lt.s32.totalorder %s12, 3
      %p126 = pnand %p124, %p125
      %p127 = pneg %p126
      // Predicated region
      $region25: #{bilerp_sample.1} parent=5 // pred_check
        _
      $region26: #{bilerp_sample.1} parent=5 // pred_check_branch
        %129 = sbr.rel (%p126) target = $region28
      $region27: #{bilerp_sample.1} parent=5 // pred_region
        %s130 = ssub.s32 %s12, 1
        // Predicated region
        $region29: #{bilerp_sample.1} parent=27 // pred_check
          %p131 = pneg %p33
        $region30: #{bilerp_sample.1} parent=27 // pred_check_branch
          %133 = sbr.rel (%p131) target = $region32
        $region31: #{bilerp_sample.1} parent=27 // pred_region
          %134 = dma.done [#allocation3], 768
        $region32: #{bilerp_sample.1} parent=27 // pred_fallthru
          _
        %p135 = pneg %p33
        %p136 = pneg %p30
        %p137 = scmp.lt.s32.totalorder %s17, 1
        %s138 = scalar_select %p137, %s17, 1
        %s139 = smul.addr %s138, 2
        %s140 = scalar_lea.vmem %s1, %s139
        %p141 = pneg %p59
        %p142 = pneg %p56
        %p143 = pneg %p85
        %p144 = pneg %p82
        %s145 = sand.u32 %s72, 1
        %s146 = scalar_lea.sflag [#allocation4], %s145
        %s147 = sand.u32 %s72, 1
        %s148 = smul.addr %s147, 4
        %s149 = scalar_lea.vmem [#allocation5], %s148
        %p150 = scmp.lt.s32.totalorder %s17, 1
        %s151 = scalar_select %p150, %s17, 1
        %s152 = smul.addr %s151, 2
        %s153 = scalar_lea.vmem %s1, %s152
        %v154 = vld [vmem:[%s153] sm:$0x3]
        %v155 = vmul.f32 %v154, 16.0
        %v156 = vcvt.f32.s32.to.zero.pseudo %v155
        %v157 = vcvt.s32.f32 %v156
        %v158 = vsub.f32 %v155, %v157
        %vm159 = vcmp.gt.s32.totalorder %v156, 0
        %v160 = vsel %vm159, %v156, 0
        %vm161 = vcmp.lt.s32.totalorder %v160, 15
        %v162 = vsel %vm161, %v160, 15
        %v163 = vadd.s32 %v162, 1
        %vm164 = vcmp.lt.s32.totalorder %v163, 15
        %v165 = vsel %vm164, %v163, 15
        %v166 = vlaneseq
        %v167 = vshrl.u32 %v166, 7
        %v168 = vadd.s32 %v167, 8
        %v169 = vlaneseq
        %v170 = vshrl.u32 %v169, 7
        %v171 = vsub.s32 0, %v170
        %v172 = vrot.slane %v162, %v171
        %vm173 = vcmp.eq.s32.totalorder %v167, %v172
        %vm174 = vcmp.eq.s32.totalorder %v168, %v172
        %v175 = vsel %vm173, 1, 0
        %v176 = vsel %vm174, 1, 0
        %v177 = vcvt.s32.f32 %v175
        %v178 = vcvt.s32.f32 %v176
        %v179 = vsub.f32 1.0, %v158
        %v180 = vlaneseq
        %v181 = vshrl.u32 %v180, 7
        %v182 = vsub.s32 0, %v181
        %v183 = vrot.slane %v179, %v182
        %v184 = vmul.f32 %v177, %v183
        %v185 = vmul.f32 %v178, %v183
        %v186 = vlaneseq
        %v187 = vshrl.u32 %v186, 7
        %v188 = vsub.s32 0, %v187
        %v189 = vrot.slane %v165, %v188
        %vm190 = vcmp.eq.s32.totalorder %v167, %v189
        %vm191 = vcmp.eq.s32.totalorder %v168, %v189
        %v192 = vsel %vm190, 1, 0
        %v193 = vsel %vm191, 1, 0
        %v194 = vcvt.s32.f32 %v192
        %v195 = vcvt.s32.f32 %v193
        %v196 = vlaneseq
        %v197 = vshrl.u32 %v196, 7
        %v198 = vsub.s32 0, %v197
        %v199 = vrot.slane %v158, %v198
        %v200 = vmul.f32 %v194, %v199
        %v201 = vmul.f32 %v195, %v199
        %v202 = vadd.f32 %v184, %v200
        %v203 = vadd.f32 %v185, %v201
        %v204 = vlaneseq
        %v205 = vshrl.u32 %v204, 7
        %v206 = vsub.s32 1, %v205
        %v207 = vrot.slane %v162, %v206
        %vm208 = vcmp.eq.s32.totalorder %v167, %v207
        %vm209 = vcmp.eq.s32.totalorder %v168, %v207
        %v210 = vsel %vm208, 1, 0
        %v211 = vsel %vm209, 1, 0
        %v212 = vcvt.s32.f32 %v210
        %v213 = vcvt.s32.f32 %v211
        %v214 = vlaneseq
        %v215 = vshrl.u32 %v214, 7
        %v216 = vsub.s32 1, %v215
        %v217 = vrot.slane %v179, %v216
        %v218 = vmul.f32 %v212, %v217
        %v219 = vmul.f32 %v213, %v217
        %v220 = vlaneseq
        %v221 = vshrl.u32 %v220, 7
        %v222 = vsub.s32 1, %v221
        %v223 = vrot.slane %v165, %v222
        %vm224 = vcmp.eq.s32.totalorder %v167, %v223
        %vm225 = vcmp.eq.s32.totalorder %v168, %v223
        %v226 = vsel %vm224, 1, 0
        %v227 = vsel %vm225, 1, 0
        %v228 = vcvt.s32.f32 %v226
        %v229 = vcvt.s32.f32 %v227
        %v230 = vlaneseq
        %v231 = vshrl.u32 %v230, 7
        %v232 = vsub.s32 1, %v231
        %v233 = vrot.slane %v158, %v232
        %v234 = vmul.f32 %v228, %v233
        %v235 = vmul.f32 %v229, %v233
        %v236 = vadd.f32 %v218, %v234
        %v237 = vadd.f32 %v219, %v235
        %v238 = vld [vmem:[#allocation2] sm:$0xff]
        %v239 = vld [vmem:[#allocation2 + $0x8] sm:$0xff]
        %v240 = vld [vmem:[#allocation2 + $0x10] sm:$0xff]
        %v241 = vld [vmem:[#allocation2 + $0x18] sm:$0xff]
        %v242 = vld [vmem:[#allocation2 + $0x20] sm:$0xff]
        %v243 = vld [vmem:[#allocation2 + $0x28] sm:$0xff]
        %vm244 = vcmask 130048
        %v246 = vsel %vm244, %v238, 0
        %v249 = vsel %vm244, %v239, 0
        %v252 = vsel %vm244, %v240, 0
        %v255 = vsel %vm244, %v241, 0
        %v258 = vsel %vm244, %v242, 0
        %v261 = vsel %vm244, %v243, 0
        %263 = vmatprep.subr.mxu0 0.0
        %264 = vmatpush1.msra.mxu0 %v202
        %265 = vmatprep.subr.mxu0 0.0
        %266 = vmatpush1.msra.mxu0 %v203
        %267 = vmatprep.subr.mxu0 0.0
        %268 = vmatpush1.msra.mxu0 0.0
        %269 = vmatprep.subr.mxu0 0.0
        %270 = vmatpush1.msra.mxu0 0.0
        %271 = vmatprep.subr.mxu0 0.0
        %272 = vmatpush1.msra.mxu0 0.0
        %273 = vmatprep.subr.mxu0 0.0
        %274 = vmatpush1.msra.mxu0 0.0
        %275 = vmatprep.subr.mxu0 0.0
        %276 = vmatpush1.msra.mxu0 0.0
        %277 = vmatprep.subr.mxu0 0.0
        %278 = vmatpush1.msra.mxu0 0.0
        %279 = vmatprep.subr.mxu0 0.0
        %280 = vmatpush1.msra.mxu0 0.0
        %281 = vmatprep.subr.mxu0 0.0
        %282 = vmatpush1.msra.mxu0 0.0
        %283 = vmatprep.subr.mxu0 0.0
        %284 = vmatpush1.msra.mxu0 0.0
        %285 = vmatprep.subr.mxu0 0.0
        %286 = vmatpush1.msra.mxu0 0.0
        %287 = vmatprep.subr.mxu0 0.0
        %288 = vmatpush1.msra.mxu0 0.0
        %289 = vmatprep.subr.mxu0 0.0
        %290 = vmatpush1.msra.mxu0 0.0
        %291 = vmatprep.subr.mxu0 0.0
        %292 = vmatpush1.msra.mxu0 0.0
        %293 = vmatprep.subr.mxu0 0.0
        %294 = vmatpush1.msra.mxu0 0.0
        %295 = vmatprep.subr.mxu0 0.0
        %296 = vmatpush1.msra.mxu0 0.0
        %297 = vmatprep.subr.mxu0 0.0
        %298 = vmatpush1.msra.mxu0 0.0
        %299 = vmatprep.subr.mxu0 0.0
        %300 = vmatpush1.msra.mxu0 0.0
        %301 = vmatprep.subr.mxu0 0.0
        %302 = vmatpush1.msra.mxu0 0.0
        %303 = vmatprep.subr.mxu0 0.0
        %304 = vmatpush1.msra.mxu0 0.0
        %305 = vmatprep.subr.mxu0 0.0
        %306 = vmatpush1.msra.mxu0 0.0
        %307 = vmatprep.subr.mxu0 0.0
        %308 = vmatpush1.msra.mxu0 0.0
        %309 = vmatprep.subr.mxu0 0.0
        %310 = vmatpush1.msra.mxu0 0.0
        %311 = vmatprep.subr.mxu0 0.0
        %312 = vmatpush1.msra.mxu0 0.0
        %313 = vmatprep.subr.mxu0 0.0
        %314 = vmatpush1.msra.mxu0 0.0
        %315 = vmatprep.subr.mxu0 0.0
        %316 = vmatpush1.msra.mxu0 0.0
        %317 = vmatprep.subr.mxu0 0.0
        %318 = vmatpush1.msra.mxu0 0.0
        %319 = vmatprep.subr.mxu0 0.0
        %320 = vmatpush1.msra.mxu0 0.0
        %321 = vmatprep.subr.mxu0 0.0
        %322 = vmatpush1.msra.mxu0 0.0
        %323 = vmatprep.subr.mxu0 0.0
        %324 = vmatpush1.msra.mxu0 0.0
        %325 = vmatprep.subr.mxu0 0.0
        %326 = vmatpush1.msra.mxu0 0.0
        %327 = vmatprep.mubr.f32.mxu0 0.0
        %328 = vmatmul.mubr.f32.gmra.mrb[0].mxu0 %v246
        %v329 = vpop.f32.mrb[0].mxu0
        %v330 = vadd.f32 0.0, %v329
        %v331 = vpop.f32.mrb[0].mxu0
        %332 = vmatprep.mubr.f32.mxu0 0.0
        %333 = vmatmul.mubr.f32.gmra.mrb[0].mxu0 %v249
        %v334 = vpop.f32.mrb[0].mxu0
        %v335 = vadd.f32 0.0, %v334
        %v336 = vpop.f32.mrb[0].mxu0
        %337 = vmatprep.mubr.f32.mxu0 0.0
        %338 = vmatmul.mubr.f32.gmra.mrb[0].mxu0 %v252
        %v339 = vpop.f32.mrb[0].mxu0
        %v340 = vadd.f32 0.0, %v339
        %v341 = vpop.f32.mrb[0].mxu0
        %342 = vmatprep.mubr.f32.mxu0 0.0
        %343 = vmatmul.mubr.f32.gmra.mrb[0].mxu0 %v255
        %v344 = vpop.f32.mrb[0].mxu0
        %v345 = vadd.f32 0.0, %v344
        %v346 = vpop.f32.mrb[0].mxu0
        %347 = vmatprep.mubr.f32.mxu0 0.0
        %348 = vmatmul.mubr.f32.gmra.mrb[0].mxu0 %v258
        %v349 = vpop.f32.mrb[0].mxu0
        %v350 = vadd.f32 0.0, %v349
        %v351 = vpop.f32.mrb[0].mxu0
        %352 = vmatprep.mubr.f32.mxu0 0.0
        %353 = vmatmul.mubr.f32.gmra.mrb[0].mxu0 %v261
        %v354 = vpop.f32.mrb[0].mxu0
        %v355 = vadd.f32 0.0, %v354
        %v356 = vpop.f32.mrb[0].mxu0
        %357 = vdwg.mxu0
        %v358 = vmul.f32 %v330, %v236
        %v359 = vmul.f32 %v335, %v237
        %v360 = vadd.f32 %v358, %v359
        %v361 = vrot.slane %v360, 4
        %v362 = vadd.f32 %v360, %v361
        %v363 = vrot.slane %v362, 2
        %v364 = vadd.f32 %v362, %v363
        %v365 = vrot.slane %v364, 1
        %v366 = vadd.f32 %v364, %v365
        %v367 = vmul.f32 %v340, %v236
        %v368 = vmul.f32 %v345, %v237
        %v369 = vadd.f32 %v367, %v368
        %v370 = vrot.slane %v369, 4
        %v371 = vadd.f32 %v369, %v370
        %v372 = vrot.slane %v371, 2
        %v373 = vadd.f32 %v371, %v372
        %v374 = vrot.slane %v373, 1
        %v375 = vadd.f32 %v373, %v374
        %v376 = vmul.f32 %v350, %v236
        %v377 = vmul.f32 %v355, %v237
        %v378 = vadd.f32 %v376, %v377
        %v379 = vrot.slane %v378, 4
        %v380 = vadd.f32 %v378, %v379
        %v381 = vrot.slane %v380, 2
        %v382 = vadd.f32 %v380, %v381
        %v383 = vrot.slane %v382, 1
        %v384 = vadd.f32 %v382, %v383
        %vm385 = vcmask 1040384
        %v386 = vsel %vm385, %v366, %v375
        %vm387 = vcmask 1041408
        %v388 = vsel %vm387, %v386, %v384
        %389 = vst [vmem:[%s149] sm:$0x7] %v388
        %s390 = sand.u32 %s72, 1
        %s391 = scalar_lea.sflag [#allocation4], %s390
        %s392 = sand.u32 %s72, 1
        %s393 = smul.addr %s392, 4
        %s394 = scalar_lea.vmem [#allocation5], %s393
        // Predicated region
        $region33: #{bilerp_sample.1} parent=27 // pred_check
          %p395 = pneg %p82
        $region34: #{bilerp_sample.1} parent=27 // pred_check_branch
          %397 = sbr.rel (%p395) target = $region36
        $region35: #{bilerp_sample.1} parent=27 // pred_region
          %s399 = ssub.s32 64, 64
          %400 = vsyncadd %s391, %s399
          %s401 = smul.addr %s17, 64
          %s402 = scalar_lea.hbm %s2, %s401
          %s404 = sshll.u32 %s394, 4
          %s405 = int_to_ptr.vmem [resolvable:$true] %s404
          %407 = dma.vmem_to_hbm [thread:$0]  %s405, 64, %s402, %s391
        $region36: #{bilerp_sample.1} parent=27 // pred_fallthru
          _
      $region28: #{bilerp_sample.1} parent=5 // pred_fallthru
        _
      %p408 = scmp.le.s32.totalorder 2, %s12
      // Predicated region
      $region37: #{bilerp_sample.1} parent=5 // pred_check
        %p409 = pneg %p408
      $region38: #{bilerp_sample.1} parent=5 // pred_check_branch
        %411 = sbr.rel (%p409) target = $region40
      $region39: #{bilerp_sample.1} parent=5 // pred_region
        %s412 = ssub.s32 %s12, 2
        // Predicated region
        $region41: #{bilerp_sample.1} parent=39 // pred_check
          %p413 = pneg %p88
        $region42: #{bilerp_sample.1} parent=39 // pred_check_branch
          %415 = sbr.rel (%p413) target = $region44
        $region43: #{bilerp_sample.1} parent=39 // pred_region
          %s416 = sand.u32 %s73, 1
          %s417 = scalar_lea.sflag [#allocation4], %s416
          %s418 = sand.u32 %s73, 1
          %s419 = smul.addr %s418, 4
          %s420 = scalar_lea.vmem [#allocation5], %s419
          %421 = dma.done %s417, 64
        $region44: #{bilerp_sample.1} parent=39 // pred_fallthru
          _
      $region40: #{bilerp_sample.1} parent=5 // pred_fallthru
        _
    $region6: #{bilerp_sample.1} parent=1 // loop_footer
      %s16 = sadd.s32 1, %s12
    $region7: #{bilerp_sample.1} parent=1 // loop_footer_branch
      %11 = sbr.rel target = $region3
    $region8: #{bilerp_sample.1} parent=1 // loop_exit
      _
    %422 = vsyncpa [#allocation3], 1
    %s423 = scalar_lea.sflag [#allocation3], 1
    %424 = vsyncpa %s423, 1
    %425 = vsyncpa [#allocation4], 1
    %s426 = scalar_lea.sflag [#allocation4], 1
    %427 = vsyncpa %s426, 1

</llo_original>
